<compile_context>
chip_gen: v5e
topology: v5e:2x2
jax: 0.10.0
libtpu: 0.0.40
codegen_flags: <defaults>
</compile_context>

<pallas_src>
import functools

import jax
import jax.numpy as jnp
from jax.experimental import pallas as pl
from jax.experimental.pallas import tpu as pltpu


def _conv2d_kernel(x_ref, w_ref, b_ref, o_ref, xpad_ref, *,
                   nb, h, w, c_in, kh, kw, h_out, wspan,
                   ph, pw, sh, dh, dw):
    """One batch tile per grid step.

    x_ref:    (nb, H, W*Cin)            input tile, W folded onto lanes
    w_ref:    (KH*KW*Wspan*Cin, Npad)   block-diagonal folded filter
    b_ref:    (1, Npad)                 bias tiled over W_out, f32
    o_ref:    (nb, H_out, Npad)         lane-dense output (Npad % 128 == 0)
    xpad_ref: (nb, Hp, Wp*Cin)          padded-input VMEM scratch
    """
    dt = xpad_ref.dtype
    wp_c = xpad_ref.shape[2]

    # ---- in-kernel zero padding: zero ONLY the 4 halo stripes ---------------
    if ph > 0:
        xpad_ref[:, pl.ds(0, ph), :] = jnp.zeros((nb, ph, wp_c), dt)
        xpad_ref[:, pl.ds(ph + h, ph), :] = jnp.zeros((nb, ph, wp_c), dt)
    if pw > 0:
        xpad_ref[:, pl.ds(ph, h), pl.ds(0, pw * c_in)] = (
            jnp.zeros((nb, h, pw * c_in), dt))
        xpad_ref[:, pl.ds(ph, h), pl.ds((pw + w) * c_in, pw * c_in)] = (
            jnp.zeros((nb, h, pw * c_in), dt))
    xpad_ref[:, pl.ds(ph, h), pl.ds(pw * c_in, w * c_in)] = x_ref[...]

    # ---- im2col with W folded onto the lane axis ----------------------------
    # Each tap (i, j) is a single contiguous (nb, H_out, Wspan*Cin) lane slice;
    # the W stride and the (wo, cout) unfolding are absorbed by the
    # block-diagonal weight, so no per-wo slicing and no output repack.
    taps = []
    for i in range(kh):
        for j in range(kw):
            if sh == 1:
                rows = pl.ds(i * dh, h_out)
            else:
                rows = pl.ds(i * dh, h_out, sh)
            taps.append(xpad_ref[:, rows, pl.ds(j * dw * c_in, wspan * c_in)])
    patches = jnp.concatenate(taps, axis=-1)              # (nb, Ho, Ktot)
    patches = patches.reshape(nb * h_out, kh * kw * wspan * c_in)

    # ---- one MXU contraction -> already lane-dense (M, W_out*C_out) ---------
    acc = jnp.dot(patches, w_ref[...], preferred_element_type=jnp.float32)
    acc = acc + b_ref[...]                                 # f32 bias add
    o_ref[...] = acc.reshape(nb, h_out, o_ref.shape[2]).astype(o_ref.dtype)


def _as_pair(v):
    if isinstance(v, (tuple, list)):
        return int(v[0]), int(v[1])
    return int(v), int(v)


def _chip_info():
    """(per-core VMEM bytes, has-two-tensorcores) with conservative fallbacks."""
    vmem_cap = None
    try:
        cap = getattr(pltpu.get_tpu_info(), "vmem_capacity_bytes", None)
        if cap:
            vmem_cap = int(cap)
    except Exception:
        vmem_cap = None
    two_cores = False
    try:
        kind = jax.devices()[0].device_kind.lower()
        two_cores = ("v7" in kind) or ("7x" in kind)
    except Exception:
        pass
    if vmem_cap is not None and vmem_cap <= 80 * 1024 * 1024:
        two_cores = True                       # 64 MiB/TC is the v7x signature
    if vmem_cap is None:
        vmem_cap = 64 * 1024 * 1024            # conservative: fits every gen
    return vmem_cap, two_cores


def meta_conv2d(x_nchw, weight_oihw, bias, *, stride=1, padding=1, dilation=1,
                groups=1, compute_dtype=jnp.bfloat16):
    """F.conv2d(x, weight, bias, stride, padding, dilation, groups) on TPU.

    compute_dtype is what feeds the MXU (bf16 by default; pass jnp.float32 for
    bit-closer parity with PyTorch's f32 conv at ~2x the bandwidth cost).
    """
    n, c_in, h, w = x_nchw.shape
    c_out, c_in_w, kh, kw = weight_oihw.shape
    sh, sw = _as_pair(stride)
    ph, pw = _as_pair(padding)
    dh, dw = _as_pair(dilation)

    h_out = (h + 2 * ph - dh * (kh - 1) - 1) // sh + 1
    w_out = (w + 2 * pw - dw * (kw - 1) - 1) // sw + 1
    hp, wp = h + 2 * ph, w + 2 * pw
    wspan = (w_out - 1) * sw + 1                # input cols spanned per tap
    n_dense = w_out * c_out
    n_pad = ((n_dense + 127) // 128) * 128      # lane-dense output width
    k_tot = kh * kw * wspan * c_in

    if bias is None:
        bias = jnp.zeros((c_out,), jnp.float32)

    out_dtype = x_nchw.dtype
    out_el = jnp.dtype(out_dtype).itemsize
    comp_el = jnp.dtype(compute_dtype).itemsize

    vmem_cap, two_cores = _chip_info()

    # Per-step VMEM footprint (inputs/outputs double-buffered by BlockSpec).
    w_b = k_tot * n_pad * comp_el
    b_b = n_pad * 4
    per_in = h * w * c_in * comp_el
    per_out = h_out * n_pad * out_el
    per_scr = hp * wp * c_in * comp_el

    # Generation-aware per-step budget: ~48 MiB on 128 MiB chips (v5e/v6e),
    # ~21 MiB on v7x's 64 MiB VMEM.
    budget = max(8 * 1024 * 1024, min(48 * 1024 * 1024, vmem_cap // 3))
    min_steps = 2 if (two_cores and n >= 2) else 1   # keep both v7x TCs busy
    nb = None
    for cand in range(n, 0, -1):
        if n % cand or n // cand < min_steps:
            continue
        if 2 * (cand * (per_in + per_out) + w_b + b_b) + cand * per_scr <= budget:
            nb = cand
            break
    # TODO(synk): H_out/W_out-tiled Pallas path (KH-row halo, per-tile
    # block-diagonal weight) for images too large for whole-image blocks and
    # grouped conv are not implemented; those shapes fall back to XLA's conv.
    if (groups != 1 or c_in != c_in_w * groups or nb is None
            or w_b > 8 * 1024 * 1024):
        out = jax.lax.conv_general_dilated(
            x_nchw, weight_oihw, window_strides=(sh, sw),
            padding=((ph, ph), (pw, pw)), rhs_dilation=(dh, dw),
            dimension_numbers=("NCHW", "OIHW", "NCHW"),
            feature_group_count=groups)
        return out + bias.astype(out.dtype)[None, :, None, None]

    # ---- operand prep (fusable into the pallas_call via allow_input_fusion) -
    # NCHW -> NHWC -> (N, H, W*Cin): W folded onto the 128-lane axis; cast to
    # the MXU feed dtype once, upstream of the KH*KW im2col amplification.
    x = (jnp.transpose(x_nchw, (0, 2, 3, 1))
         .reshape(n, h, w * c_in).astype(compute_dtype))

    # Block-diagonal folded filter: row (tap, c_rel, ci) x col (wo, co) equals
    # w[co, ci, i, j] iff c_rel == wo*sw (zero rows absorb the W stride), so
    # the MXU output is already (nb*H_out, W_out*C_out) lane-dense.
    t_taps = kh * kw
    w_hwio = jnp.transpose(weight_oihw, (2, 3, 1, 0)).reshape(t_taps, c_in, c_out)
    sel = (jnp.arange(wspan)[:, None] == (jnp.arange(w_out) * sw)[None, :])
    w_bd = (w_hwio[:, None, :, None, :].astype(jnp.float32)
            * sel[None, :, None, :, None].astype(jnp.float32))
    w_bd = w_bd.reshape(k_tot, n_dense)
    w_bd = jnp.pad(w_bd, ((0, 0), (0, n_pad - n_dense))).astype(compute_dtype)

    b_bd = jnp.pad(jnp.tile(bias.astype(jnp.float32), w_out),
                   (0, n_pad - n_dense)).reshape(1, n_pad)

    needed = 2 * (nb * (per_in + per_out) + w_b + b_b) + nb * per_scr
    vmem_limit = int(min(max(2 * needed, 16 * 1024 * 1024),
                         int(0.80 * vmem_cap)))

    kernel = functools.partial(
        _conv2d_kernel, nb=nb, h=h, w=w, c_in=c_in, kh=kh, kw=kw,
        h_out=h_out, wspan=wspan, ph=ph, pw=pw, sh=sh, dh=dh, dw=dw)

    out_flat = pl.pallas_call(
        kernel,
        out_shape=jax.ShapeDtypeStruct((n, h_out, n_pad), out_dtype),
        grid_spec=pltpu.PrefetchScalarGridSpec(
            num_scalar_prefetch=0,
            grid=(n // nb,),
            in_specs=[
                pl.BlockSpec((nb, h, w * c_in), lambda b: (b, 0, 0)),
                pl.BlockSpec((k_tot, n_pad), lambda b: (0, 0)),
                pl.BlockSpec((1, n_pad), lambda b: (0, 0)),
            ],
            out_specs=pl.BlockSpec((nb, h_out, n_pad), lambda b: (b, 0, 0)),
            scratch_shapes=[pltpu.VMEM((nb, hp, wp * c_in), compute_dtype)],
        ),
        compiler_params=pltpu.CompilerParams(
            dimension_semantics=("parallel",),
            vmem_limit_bytes=vmem_limit,
            allow_input_fusion=[True, True, True],
        ),
    )(x, w_bd, b_bd)

    # (N, H_out, Npad) -> (N, H_out, W_out, C_out) -> NCHW.
    out = out_flat[:, :, :n_dense].reshape(n, h_out, w_out, c_out)
    return jnp.transpose(out, (0, 3, 1, 2))


if __name__ == "__main__":
    # MetaConv2d(in_channels=4, out_channels=8, kernel_size=3, stride=1, padding=1)
    key = jax.random.PRNGKey(0)
    kx, kw_key, kb = jax.random.split(key, 3)

    N, C_IN, H, W = 2, 4, 16, 16
    C_OUT, KH, KW = 8, 3, 3

    x = jax.random.normal(kx, (N, C_IN, H, W), jnp.float32)
    fan_in = C_IN * KH * KW
    weight = jax.random.normal(kw_key, (C_OUT, C_IN, KH, KW), jnp.float32) / jnp.sqrt(fan_in)
    bias = jax.random.normal(kb, (C_OUT,), jnp.float32) * 0.1

    conv = jax.jit(lambda a, b, c: meta_conv2d(a, b, c, stride=1, padding=1, dilation=1))
    out = jax.block_until_ready(conv(x, weight, bias))

    # Reference check against XLA's convolution (same semantics as F.conv2d).
    ref = jax.lax.conv_general_dilated(
        x, weight,
        window_strides=(1, 1),
        padding=((1, 1), (1, 1)),
        rhs_dilation=(1, 1),
        dimension_numbers=("NCHW", "OIHW", "NCHW"),
    ) + bias[None, :, None, None]

    assert out.shape == (N, C_OUT, H, W), out.shape
    # bf16 MXU operands (f32 accumulation) -> loosened tolerance.
    max_err = float(jnp.max(jnp.abs(out - ref)))
    assert jnp.allclose(out, ref, rtol=5e-2, atol=5e-2), max_err

    print("KERNEL_OK")
</pallas_src>

<mosaic_0001>
module attributes {stable_mosaic.version = 11 : i64} {
  func.func @_conv2d_kernel(%arg0: i32, %arg1: memref<2x16x64xbf16, #tpu.memory_space<vmem>>, %arg2: memref<576x128xbf16, #tpu.memory_space<vmem>>, %arg3: memref<1x128xf32, #tpu.memory_space<vmem>>, %arg4: memref<2x16x128xf32, #tpu.memory_space<vmem>>, %arg5: memref<2x18x72xbf16, #tpu.memory_space<vmem>>) attributes {dimension_semantics = [#tpu.dimension_semantics<parallel>], iteration_bounds = array<i64: 1>, scalar_prefetch = 0 : i64, scratch_operands = 1 : i64, tpu.core_type = #tpu.core_type<tc>, window_params = [{transform_indices = @transform_0, window_bounds = array<i64: 2, 16, 64>}, {pipeline_mode = #tpu.pipeline_mode<synchronous>, transform_indices = @transform_1, window_bounds = array<i64: 576, 128>}, {pipeline_mode = #tpu.pipeline_mode<synchronous>, transform_indices = @transform_2, window_bounds = array<i64: 1, 128>}, {transform_indices = @transform_3, window_bounds = array<i64: 2, 16, 128>}]} {
    %cst = arith.constant 0.000000e+00 : bf16
    %0 = vector.broadcast %cst : bf16 to vector<2x1x72xbf16>
    %c0 = arith.constant 0 : index
    %c0_0 = arith.constant 0 : index
    %c0_1 = arith.constant 0 : index
    %1 = vector.load %arg5[%c0, %c0_0, %c0_1] : memref<2x18x72xbf16, #tpu.memory_space<vmem>>, vector<2x1x72xbf16>
    tpu.vector_store %arg5[%c0, %c0_0, %c0_1], %0 {strides = array<i32>} : memref<2x18x72xbf16, #tpu.memory_space<vmem>>, vector<2x1x72xbf16>,
    %cst_2 = arith.constant 0.000000e+00 : bf16
    %2 = vector.broadcast %cst_2 : bf16 to vector<2x1x72xbf16>
    %c0_3 = arith.constant 0 : index
    %c17 = arith.constant 17 : index
    %c0_4 = arith.constant 0 : index
    %3 = vector.load %arg5[%c0_3, %c17, %c0_4] : memref<2x18x72xbf16, #tpu.memory_space<vmem>>, vector<2x1x72xbf16>
    tpu.vector_store %arg5[%c0_3, %c17, %c0_4], %2 {strides = array<i32>} : memref<2x18x72xbf16, #tpu.memory_space<vmem>>, vector<2x1x72xbf16>,
    %cst_5 = arith.constant 0.000000e+00 : bf16
    %4 = vector.broadcast %cst_5 : bf16 to vector<2x16x4xbf16>
    %c0_6 = arith.constant 0 : index
    %c1 = arith.constant 1 : index
    %c0_7 = arith.constant 0 : index
    %5 = vector.load %arg5[%c0_6, %c1, %c0_7] : memref<2x18x72xbf16, #tpu.memory_space<vmem>>, vector<2x16x4xbf16>
    tpu.vector_store %arg5[%c0_6, %c1, %c0_7], %4 {strides = array<i32>} : memref<2x18x72xbf16, #tpu.memory_space<vmem>>, vector<2x16x4xbf16>,
    %cst_8 = arith.constant 0.000000e+00 : bf16
    %6 = vector.broadcast %cst_8 : bf16 to vector<2x16x4xbf16>
    %c0_9 = arith.constant 0 : index
    %c1_10 = arith.constant 1 : index
    %c68 = arith.constant 68 : index
    %7 = vector.load %arg5[%c0_9, %c1_10, %c68] : memref<2x18x72xbf16, #tpu.memory_space<vmem>>, vector<2x16x4xbf16>
    tpu.vector_store %arg5[%c0_9, %c1_10, %c68], %6 {strides = array<i32>} : memref<2x18x72xbf16, #tpu.memory_space<vmem>>, vector<2x16x4xbf16>,
    %c0_11 = arith.constant 0 : index
    %c0_12 = arith.constant 0 : index
    %c0_13 = arith.constant 0 : index
    %8 = vector.load %arg1[%c0_11, %c0_12, %c0_13] : memref<2x16x64xbf16, #tpu.memory_space<vmem>>, vector<2x16x64xbf16>
    %c0_14 = arith.constant 0 : index
    %c1_15 = arith.constant 1 : index
    %c4 = arith.constant 4 : index
    %9 = vector.load %arg5[%c0_14, %c1_15, %c4] : memref<2x18x72xbf16, #tpu.memory_space<vmem>>, vector<2x16x64xbf16>
    tpu.vector_store %arg5[%c0_14, %c1_15, %c4], %8 {strides = array<i32>} : memref<2x18x72xbf16, #tpu.memory_space<vmem>>, vector<2x16x64xbf16>,
    %c0_16 = arith.constant 0 : index
    %c0_17 = arith.constant 0 : index
    %c0_18 = arith.constant 0 : index
    %10 = vector.load %arg5[%c0_16, %c0_17, %c0_18] : memref<2x18x72xbf16, #tpu.memory_space<vmem>>, vector<2x16x64xbf16>
    %c0_19 = arith.constant 0 : index
    %c0_20 = arith.constant 0 : index
    %c4_21 = arith.constant 4 : index
    %11 = vector.load %arg5[%c0_19, %c0_20, %c4_21] : memref<2x18x72xbf16, #tpu.memory_space<vmem>>, vector<2x16x64xbf16>
    %c0_22 = arith.constant 0 : index
    %c0_23 = arith.constant 0 : index
    %c8 = arith.constant 8 : index
    %12 = vector.load %arg5[%c0_22, %c0_23, %c8] : memref<2x18x72xbf16, #tpu.memory_space<vmem>>, vector<2x16x64xbf16>
    %c0_24 = arith.constant 0 : index
    %c1_25 = arith.constant 1 : index
    %c0_26 = arith.constant 0 : index
    %13 = vector.load %arg5[%c0_24, %c1_25, %c0_26] : memref<2x18x72xbf16, #tpu.memory_space<vmem>>, vector<2x16x64xbf16>
    %c0_27 = arith.constant 0 : index
    %c1_28 = arith.constant 1 : index
    %c4_29 = arith.constant 4 : index
    %14 = vector.load %arg5[%c0_27, %c1_28, %c4_29] : memref<2x18x72xbf16, #tpu.memory_space<vmem>>, vector<2x16x64xbf16>
    %c0_30 = arith.constant 0 : index
    %c1_31 = arith.constant 1 : index
    %c8_32 = arith.constant 8 : index
    %15 = vector.load %arg5[%c0_30, %c1_31, %c8_32] : memref<2x18x72xbf16, #tpu.memory_space<vmem>>, vector<2x16x64xbf16>
    %c0_33 = arith.constant 0 : index
    %c2 = arith.constant 2 : index
    %c0_34 = arith.constant 0 : index
    %16 = vector.load %arg5[%c0_33, %c2, %c0_34] : memref<2x18x72xbf16, #tpu.memory_space<vmem>>, vector<2x16x64xbf16>
    %c0_35 = arith.constant 0 : index
    %c2_36 = arith.constant 2 : index
    %c4_37 = arith.constant 4 : index
    %17 = vector.load %arg5[%c0_35, %c2_36, %c4_37] : memref<2x18x72xbf16, #tpu.memory_space<vmem>>, vector<2x16x64xbf16>
    %c0_38 = arith.constant 0 : index
    %c2_39 = arith.constant 2 : index
    %c8_40 = arith.constant 8 : index
    %18 = vector.load %arg5[%c0_38, %c2_39, %c8_40] : memref<2x18x72xbf16, #tpu.memory_space<vmem>>, vector<2x16x64xbf16>
    %19 = tpu.concatenate %10, %11, %12, %13, %14, %15, %16, %17, %18 in 2 : vector<2x16x64xbf16>, vector<2x16x64xbf16>, vector<2x16x64xbf16>, vector<2x16x64xbf16>, vector<2x16x64xbf16>, vector<2x16x64xbf16>, vector<2x16x64xbf16>, vector<2x16x64xbf16>, vector<2x16x64xbf16> -> vector<2x16x576xbf16>
    %20 = vector.shape_cast %19 : vector<2x16x576xbf16> to vector<32x576xbf16>
    %c0_41 = arith.constant 0 : index
    %c0_42 = arith.constant 0 : index
    %21 = vector.load %arg2[%c0_41, %c0_42] : memref<576x128xbf16, #tpu.memory_space<vmem>>, vector<576x128xbf16>
    %cst_43 = arith.constant dense<0.000000e+00> : vector<32x128xf32>
    %22 = tpu.matmul %20, %21, %cst_43 {dimension_numbers = #tpu.dot_dimension_numbers<[1], [0], [0], [1], [0, 0, 1, 1], [], []>} : vector<32x576xbf16>, vector<576x128xbf16>, vector<32x128xf32> -> vector<32x128xf32>
    %c0_44 = arith.constant 0 : index
    %c0_45 = arith.constant 0 : index
    %23 = vector.load %arg3[%c0_44, %c0_45] : memref<1x128xf32, #tpu.memory_space<vmem>>, vector<1x128xf32>
    %24 = vector.broadcast %23 : vector<1x128xf32> to vector<32x128xf32>
    %25 = arith.addf %22, %24 : vector<32x128xf32>
    %26 = vector.shape_cast %25 : vector<32x128xf32> to vector<2x16x128xf32>
    %c0_46 = arith.constant 0 : index
    %c0_47 = arith.constant 0 : index
    %c0_48 = arith.constant 0 : index
    %27 = vector.load %arg4[%c0_46, %c0_47, %c0_48] : memref<2x16x128xf32, #tpu.memory_space<vmem>>, vector<2x16x128xf32>
    tpu.vector_store %arg4[%c0_46, %c0_47, %c0_48], %26 {strides = array<i32>} : memref<2x16x128xf32, #tpu.memory_space<vmem>>, vector<2x16x128xf32>,
    return
  }
  func.func @transform_0(%arg0: i32) -> (i32, i32, i32) {
    %c0_i32 = arith.constant 0 : i32
    %c0_i32_0 = arith.constant 0 : i32
    %c0_i32_1 = arith.constant 0 : i32
    return %arg0, %c0_i32, %c0_i32_0 : i32, i32, i32
  }
  func.func @transform_1(%arg0: i32) -> (i32, i32) {
    %c0_i32 = arith.constant 0 : i32
    %c0_i32_0 = arith.constant 0 : i32
    %c0_i32_1 = arith.constant 0 : i32
    return %c0_i32, %c0_i32_0 : i32, i32
  }
  func.func @transform_2(%arg0: i32) -> (i32, i32) {
    %c0_i32 = arith.constant 0 : i32
    %c0_i32_0 = arith.constant 0 : i32
    %c0_i32_1 = arith.constant 0 : i32
    return %c0_i32, %c0_i32_0 : i32, i32
  }
  func.func @transform_3(%arg0: i32) -> (i32, i32, i32) {
    %c0_i32 = arith.constant 0 : i32
    %c0_i32_0 = arith.constant 0 : i32
    %c0_i32_1 = arith.constant 0 : i32
    return %arg0, %c0_i32, %c0_i32_0 : i32, i32, i32
  }
}

</mosaic_0001>

<llo_original>
// kernel: tile.8
$region0: #{tile.8}
  #allocation0 [shape = 's32[1]{0}', space=sflag, size = 0x4, scoped, tag = 'scoped memory for tile.8']
  %s0 = inlined_call_operand.vmem [shape: f32[8], index: 0, kind: input, shape index: {}]
  %s1 = inlined_call_operand.vmem [shape: f32[16,8], index: 1, kind: output, shape index: {}]
  // Predicated region
  $region2: #{tile.8} parent=0 // pred_check
    _
  $region3: #{tile.8} parent=0 // pred_check_branch
    %3 = sbr.rel (0) target = $region5
  $region4: #{tile.8} parent=0 // pred_region
    _
  $region5: #{tile.8} parent=0 // pred_fallthru
    _
  %v4 = vld [vmem:[%s0] ss:$0 sm:$0xff]
  %5 = vst [vmem:[%s1] sm:$0xff] %v4
  %s6 = scalar_lea.vmem %s1, 8
  %7 = vst [vmem:[%s6] sm:$0xff] %v4

// kernel: _lambda_.1
$region0: #{_lambda_.1}
  #allocation0 [shape = 'u32[]', space=smem, size = 0x4, offset = 0x4, fixed_abs, tag = 'smem constant byte address 0x4 - core index']
  #allocation1 [shape = 'u32[72,128]{1,0:T(1,128)}', space=vmem, size = 0x9000, scoped, tag = 'internal scratch']
  #allocation2 [shape = 'bf16[2,18,72]{2,1,0:T(8,128)(2,1)}', space=vmem, size = 0x3000, scoped, tag = 'scratch operand']
  %s0 = inlined_call_operand.vmem [shape: bf16[2,16,64], index: 0, kind: input, shape index: {}]
  %s1 = inlined_call_operand.vmem [shape: bf16[576,128], index: 1, kind: input, shape index: {}]
  %s2 = inlined_call_operand.vmem [shape: f32[1,128], index: 2, kind: input, shape index: {}]
  %s3 = inlined_call_operand.vmem [shape: f32[2,16,128], index: 3, kind: output, shape index: {}]
  %s4 = sld [smem:[#allocation0]]
  $region22: #{_lambda_.1} parent=0
    _
  %s6 = ssub.s32 1, %s4
  %s7 = scalar_select 0, %s6, %s4
  // Predicated region
  $region2: #{_lambda_.1} parent=0 // pred_check
    _
  $region3: #{_lambda_.1} parent=0 // pred_check_branch
    %9 = sbr.rel (0) target = $region5
  $region4: #{_lambda_.1} parent=0 // pred_region
    _
  $region5: #{_lambda_.1} parent=0 // pred_fallthru
    _
  // Predicated region
  $region6: #{_lambda_.1} parent=0 // pred_check
    _
  $region7: #{_lambda_.1} parent=0 // pred_check_branch
    %11 = sbr.rel (0) target = $region9
  $region8: #{_lambda_.1} parent=0 // pred_region
    _
  $region9: #{_lambda_.1} parent=0 // pred_fallthru
    _
  // Predicated region
  $region10: #{_lambda_.1} parent=0 // pred_check
    _
  $region11: #{_lambda_.1} parent=0 // pred_check_branch
    %13 = sbr.rel (0) target = $region13
  $region12: #{_lambda_.1} parent=0 // pred_region
    _
  $region13: #{_lambda_.1} parent=0 // pred_fallthru
    _
  %vm15 = vcmask 581632
  %vm16 = vsmask.f32 256
  %vm17 = vmand %vm15, %vm16
  %v18 = vld [vmem:[#allocation2] sm:$0x1]
  %v19 = vsel %vm17, 0, %v18
  %20 = vst [vmem:[#allocation2] sm:$0x1] %v19
  %v21 = vld [vmem:[#allocation2 + $0xc] sm:$0x1]
  %v22 = vsel %vm17, 0, %v21
  %23 = vst [vmem:[#allocation2 + $0xc] sm:$0x1] %v22
  %vm24 = vsmask.f32 7938
  %vm25 = vmand %vm15, %vm24
  %v26 = vld [vmem:[#allocation2 + $0x8] sm:$0x1]
  %v27 = vsel %vm25, 0, %v26
  %28 = vst [vmem:[#allocation2 + $0x8] sm:$0x1] %v27
  %v29 = vld [vmem:[#allocation2 + $0x14] sm:$0x1]
  %v30 = vsel %vm25, 0, %v29
  %31 = vst [vmem:[#allocation2 + $0x14] sm:$0x1] %v30
  %vm32 = vcmask 27648
  %vm33 = vmand %vm32, %vm24
  %v34 = vld [vmem:[#allocation2] sm:$0xf]
  %v35 = vsel %vm33, 0, %v34
  %36 = vst [vmem:[#allocation2] sm:$0xf] %v35
  %vm37 = vcmask 27648
  %38 = vst.msk [vmem:[#allocation2 + $0x4] sm:$0xf] %vm37, 0
  %vm39 = vcmask 24576
  %vm40 = vmand %vm39, %vm16
  %v41 = vld [vmem:[#allocation2 + $0x8] sm:$0x1]
  %v42 = vsel %vm40, 0, %v41
  %43 = vst [vmem:[#allocation2 + $0x8] sm:$0x1] %v42
  %v44 = vld [vmem:[#allocation2 + $0xc] sm:$0xf]
  %v45 = vsel %vm33, 0, %v44
  %46 = vst [vmem:[#allocation2 + $0xc] sm:$0xf] %v45
  %47 = vst.msk [vmem:[#allocation2 + $0x10] sm:$0xf] %vm37, 0
  %v48 = vld [vmem:[#allocation2 + $0x14] sm:$0x1]
  %v49 = vsel %vm40, 0, %v48
  %50 = vst [vmem:[#allocation2 + $0x14] sm:$0x1] %v49
  %vm51 = vcmask 585248
  %vm52 = vmand %vm51, %vm24
  %v53 = vld [vmem:[#allocation2] sm:$0xf]
  %v54 = vsel %vm52, 0, %v53
  %55 = vst [vmem:[#allocation2] sm:$0xf] %v54
  %vm56 = vcmask 585248
  %57 = vst.msk [vmem:[#allocation2 + $0x4] sm:$0xf] %vm56, 0
  %vm58 = vcmask 582176
  %vm59 = vmand %vm58, %vm16
  %v60 = vld [vmem:[#allocation2 + $0x8] sm:$0x1]
  %v61 = vsel %vm59, 0, %v60
  %62 = vst [vmem:[#allocation2 + $0x8] sm:$0x1] %v61
  %v63 = vld [vmem:[#allocation2 + $0xc] sm:$0xf]
  %v64 = vsel %vm52, 0, %v63
  %65 = vst [vmem:[#allocation2 + $0xc] sm:$0xf] %v64
  %66 = vst.msk [vmem:[#allocation2 + $0x10] sm:$0xf] %vm56, 0
  %v67 = vld [vmem:[#allocation2 + $0x14] sm:$0x1]
  %v68 = vsel %vm59, 0, %v67
  %69 = vst [vmem:[#allocation2 + $0x14] sm:$0x1] %v68
  %v70 = vld [vmem:[%s0] sm:$0xf]
  %v71 = vld [vmem:[%s0 + $0x4] sm:$0xf]
  %v72 = vld [vmem:[%s0 + $0x8] sm:$0xf]
  %v73 = vld [vmem:[%s0 + $0xc] sm:$0xf]
  %vm74 = vsmask.f32 4368
  %vm75 = vmor %vm16, %vm74
  %v77 = vshrl.u32 %v70, 16
  %v79 = vrot.slane %v77, 7
  %v80 = vshll.u32 %v70, 16
  %v82 = vor.u32 %v79, %v80
  %v83 = vrot.slane %v79, 4
  %v85 = vshrl.u32 %v71, 16
  %v87 = vrot.slane %v85, 7
  %v88 = vshll.u32 %v71, 16
  %v90 = vor.u32 %v87, %v88
  %v91 = vsel %vm75, %v83, %v90
  %v92 = vrot.slane %v87, 4
  %v94 = vshrl.u32 %v72, 16
  %v96 = vrot.slane %v94, 7
  %v97 = vshll.u32 %v72, 16
  %v99 = vor.u32 %v96, %v97
  %v100 = vrot.slane %v96, 4
  %v102 = vshrl.u32 %v73, 16
  %v104 = vrot.slane %v102, 7
  %v105 = vshll.u32 %v73, 16
  %v107 = vor.u32 %v104, %v105
  %v108 = vsel %vm75, %v100, %v107
  %v109 = vrot.slane %v104, 4
  %110 = vrot.lane.b32.xlu0 %v82, 4
  %v111 = vpop.permute.xlu0 %110
  %112 = vrot.lane.b32.xlu0 %v91, 4
  %v113 = vpop.permute.xlu0 %112
  %114 = vrot.lane.b32.xlu0 %v92, 4
  %v115 = vpop.permute.xlu0 %114
  %116 = vrot.lane.b32.xlu0 %v99, 4
  %v117 = vpop.permute.xlu0 %116
  %118 = vrot.lane.b32.xlu0 %v108, 4
  %v119 = vpop.permute.xlu0 %118
  %120 = vrot.lane.b32.xlu0 %v109, 4
  %v121 = vpop.permute.xlu0 %120
  %vm128 = vcmask 551968
  %vm129 = vmand %vm128, %vm24
  %v130 = vld [vmem:[#allocation2] sm:$0xf]
  %v131 = vsel %vm129, %v111, %v130
  %132 = vst [vmem:[#allocation2] sm:$0xf] %v131
  %vm133 = vcmask 551968
  %134 = vst.msk [vmem:[#allocation2 + $0x4] sm:$0xf] %vm133, %v113
  %vm135 = vcmask 548896
  %vm136 = vmand %vm135, %vm16
  %v137 = vld [vmem:[#allocation2 + $0x8] sm:$0x1]
  %v138 = vsel %vm136, %v115, %v137
  %139 = vst [vmem:[#allocation2 + $0x8] sm:$0x1] %v138
  %v140 = vld [vmem:[#allocation2 + $0xc] sm:$0xf]
  %v141 = vsel %vm129, %v117, %v140
  %142 = vst [vmem:[#allocation2 + $0xc] sm:$0xf] %v141
  %143 = vst.msk [vmem:[#allocation2 + $0x10] sm:$0xf] %vm133, %v119
  %v144 = vld [vmem:[#allocation2 + $0x14] sm:$0x1]
  %v145 = vsel %vm136, %v121, %v144
  %146 = vst [vmem:[#allocation2 + $0x14] sm:$0x1] %v145
  %v147 = vld [vmem:[#allocation2] sm:$0xf]
  %v148 = vld [vmem:[#allocation2 + $0x4] sm:$0xf]
  %v149 = vld [vmem:[#allocation2 + $0xc] sm:$0xf]
  %v150 = vld [vmem:[#allocation2 + $0x10] sm:$0xf]
  %v151 = vld [vmem:[#allocation2 + $0x8] sm:$0x1]
  %v152 = vld [vmem:[#allocation2 + $0x14] sm:$0x1]
  %v153 = vld [vmem:[#allocation2] sm:$0xe]
  %v154 = vld [vmem:[#allocation2 + $0xc] sm:$0xe]
  %v159 = vunpack.c.l.b16 %v147
  %v160 = vunpack.c.l.b16 %v148
  %v161 = vunpack.c.l.b16 %v149
  %v162 = vunpack.c.l.b16 %v150
  %v163 = vpack.c.b16 %v160, %v159
  %v164 = vpack.c.b16 %v162, %v161
  %165 = vrot.lane.b32.xlu0 %v163, 60
  %v166 = vpop.permute.xlu0 %165
  %167 = vrot.lane.b32.xlu0 %v164, 60
  %v168 = vpop.permute.xlu0 %167
  %169 = vrot.lane.b32.xlu0 %v163, 120
  %v170 = vpop.permute.xlu0 %169
  %171 = vrot.lane.b32.xlu0 %v164, 120
  %v172 = vpop.permute.xlu0 %171
  %v175 = vunpack.c.l.b16 %v151
  %v176 = vunpack.c.l.b16 %v152
  %v177 = vpack.c.b16 %v175, %v175
  %v178 = vpack.c.b16 %v176, %v176
  %vm179 = vsmask.f32 7424
  %v181 = vshrl.u32 %v163, 16
  %v183 = vshll.u32 %v163, 16
  %v185 = vrot.slane %v183, 1
  %v186 = vor.u32 %v181, %v185
  %v188 = vshll.u32 %v177, 16
  %v190 = vrot.slane %v188, 1
  %v191 = vsel %vm179, %v186, %v190
  %v193 = vshrl.u32 %v164, 16
  %v195 = vshll.u32 %v164, 16
  %v197 = vrot.slane %v195, 1
  %v198 = vor.u32 %v193, %v197
  %v200 = vshll.u32 %v178, 16
  %v202 = vrot.slane %v200, 1
  %v203 = vsel %vm179, %v198, %v202
  %204 = vrot.lane.b32.xlu0 %v191, 64
  %v205 = vpop.permute.xlu0 %204
  %206 = vrot.lane.b32.xlu0 %v203, 64
  %v207 = vpop.permute.xlu0 %206
  %208 = vrot.lane.b32.xlu0 %v191, 124
  %v209 = vpop.permute.xlu0 %208
  %210 = vrot.lane.b32.xlu0 %v203, 124
  %v211 = vpop.permute.xlu0 %210
  %212 = vrot.lane.b32.xlu0 %v191, 56
  %v213 = vpop.permute.xlu0 %212
  %214 = vrot.lane.b32.xlu0 %v203, 56
  %v215 = vpop.permute.xlu0 %214
  %v218 = vunpack.c.l.b16 %v153
  %v219 = vunpack.c.l.b16 %v154
  %v220 = vpack.c.b16 %v160, %v218
  %v221 = vpack.c.b16 %v162, %v219
  %vm222 = vcmask 1046528
  %v223 = vrot.slane %v220, 1
  %v224 = vrot.slane %v177, 1
  %v225 = vsel %vm222, %v223, %v224
  %v226 = vrot.slane %v221, 1
  %v227 = vrot.slane %v178, 1
  %v228 = vsel %vm222, %v226, %v227
  %229 = vrot.lane.b32.xlu0 %v225, 60
  %v230 = vpop.permute.xlu0 %229
  %231 = vrot.lane.b32.xlu0 %v228, 60
  %v232 = vpop.permute.xlu0 %231
  %233 = vrot.lane.b32.xlu0 %v225, 120
  %v234 = vpop.permute.xlu0 %233
  %235 = vrot.lane.b32.xlu0 %v228, 120
  %v236 = vpop.permute.xlu0 %235
  %vm237 = vcmask 523264
  %v239 = vsel %vm237, %v163, %v166
  %v242 = vsel %vm237, %v164, %v168
  %v246 = vsel %vm237, %v170, %v205
  %v250 = vsel %vm237, %v172, %v207
  %v254 = vsel %vm237, %v209, %v213
  %v258 = vsel %vm237, %v211, %v215
  %v262 = vsel %vm237, %v225, %v230
  %v266 = vsel %vm237, %v228, %v232
  %v268 = vld [vmem:[%s1] sm:$0xf]
  %v269 = vld [vmem:[%s1 + $0x4] sm:$0xf]
  %v270 = vld [vmem:[%s1 + $0x8] sm:$0xf]
  %v271 = vld [vmem:[%s1 + $0xc] sm:$0xf]
  %v272 = vld [vmem:[%s1 + $0x10] sm:$0xf]
  %v273 = vld [vmem:[%s1 + $0x14] sm:$0xf]
  %v274 = vld [vmem:[%s1 + $0x18] sm:$0xf]
  %v275 = vld [vmem:[%s1 + $0x1c] sm:$0xf]
  %v276 = vld [vmem:[%s1 + $0x20] sm:$0xf]
  %v277 = vld [vmem:[%s1 + $0x24] sm:$0xf]
  %v278 = vld [vmem:[%s1 + $0x28] sm:$0xf]
  %v279 = vld [vmem:[%s1 + $0x2c] sm:$0xf]
  %v280 = vld [vmem:[%s1 + $0x30] sm:$0xf]
  %v281 = vld [vmem:[%s1 + $0x34] sm:$0xf]
  %v282 = vld [vmem:[%s1 + $0x38] sm:$0xf]
  %v283 = vld [vmem:[%s1 + $0x3c] sm:$0xf]
  %v284 = vld [vmem:[%s1 + $0x40] sm:$0xf]
  %v285 = vld [vmem:[%s1 + $0x44] sm:$0xf]
  %v286 = vld [vmem:[%s1 + $0x48] sm:$0xf]
  %v287 = vld [vmem:[%s1 + $0x4c] sm:$0xf]
  %v288 = vld [vmem:[%s1 + $0x50] sm:$0xf]
  %v289 = vld [vmem:[%s1 + $0x54] sm:$0xf]
  %v290 = vld [vmem:[%s1 + $0x58] sm:$0xf]
  %v291 = vld [vmem:[%s1 + $0x5c] sm:$0xf]
  %v292 = vld [vmem:[%s1 + $0x60] sm:$0xf]
  %v293 = vld [vmem:[%s1 + $0x64] sm:$0xf]
  %v294 = vld [vmem:[%s1 + $0x68] sm:$0xf]
  %v295 = vld [vmem:[%s1 + $0x6c] sm:$0xf]
  %v296 = vld [vmem:[%s1 + $0x70] sm:$0xf]
  %v297 = vld [vmem:[%s1 + $0x74] sm:$0xf]
  %v298 = vld [vmem:[%s1 + $0x78] sm:$0xf]
  %v299 = vld [vmem:[%s1 + $0x7c] sm:$0xf]
  %v300 = vld [vmem:[%s1 + $0x80] sm:$0xf]
  %v301 = vld [vmem:[%s1 + $0x84] sm:$0xf]
  %v302 = vld [vmem:[%s1 + $0x88] sm:$0xf]
  %v303 = vld [vmem:[%s1 + $0x8c] sm:$0xf]
  %v304 = vld [vmem:[%s1 + $0x90] sm:$0xf]
  %v305 = vld [vmem:[%s1 + $0x94] sm:$0xf]
  %v306 = vld [vmem:[%s1 + $0x98] sm:$0xf]
  %v307 = vld [vmem:[%s1 + $0x9c] sm:$0xf]
  %v308 = vld [vmem:[%s1 + $0xa0] sm:$0xf]
  %v309 = vld [vmem:[%s1 + $0xa4] sm:$0xf]
  %v310 = vld [vmem:[%s1 + $0xa8] sm:$0xf]
  %v311 = vld [vmem:[%s1 + $0xac] sm:$0xf]
  %v312 = vld [vmem:[%s1 + $0xb0] sm:$0xf]
  %v313 = vld [vmem:[%s1 + $0xb4] sm:$0xf]
  %v314 = vld [vmem:[%s1 + $0xb8] sm:$0xf]
  %v315 = vld [vmem:[%s1 + $0xbc] sm:$0xf]
  %v316 = vld [vmem:[%s1 + $0xc0] sm:$0xf]
  %v317 = vld [vmem:[%s1 + $0xc4] sm:$0xf]
  %v318 = vld [vmem:[%s1 + $0xc8] sm:$0xf]
  %v319 = vld [vmem:[%s1 + $0xcc] sm:$0xf]
  %v320 = vld [vmem:[%s1 + $0xd0] sm:$0xf]
  %v321 = vld [vmem:[%s1 + $0xd4] sm:$0xf]
  %v322 = vld [vmem:[%s1 + $0xd8] sm:$0xf]
  %v323 = vld [vmem:[%s1 + $0xdc] sm:$0xf]
  %v324 = vld [vmem:[%s1 + $0xe0] sm:$0xf]
  %v325 = vld [vmem:[%s1 + $0xe4] sm:$0xf]
  %v326 = vld [vmem:[%s1 + $0xe8] sm:$0xf]
  %v327 = vld [vmem:[%s1 + $0xec] sm:$0xf]
  %v328 = vld [vmem:[%s1 + $0xf0] sm:$0xf]
  %v329 = vld [vmem:[%s1 + $0xf4] sm:$0xf]
  %v330 = vld [vmem:[%s1 + $0xf8] sm:$0xf]
  %v331 = vld [vmem:[%s1 + $0xfc] sm:$0xf]
  %v332 = vld [vmem:[%s1 + $0x100] sm:$0xf]
  %v333 = vld [vmem:[%s1 + $0x104] sm:$0xf]
  %v334 = vld [vmem:[%s1 + $0x108] sm:$0xf]
  %v335 = vld [vmem:[%s1 + $0x10c] sm:$0xf]
  %v336 = vld [vmem:[%s1 + $0x110] sm:$0xf]
  %v337 = vld [vmem:[%s1 + $0x114] sm:$0xf]
  %v338 = vld [vmem:[%s1 + $0x118] sm:$0xf]
  %v339 = vld [vmem:[%s1 + $0x11c] sm:$0xf]
  %v340 = vld [vmem:[%s2] sm:$0x1]
  %v342 = vperm.slane %v340, 0
  %v416 = vunpack.c.l.b16 %v268
  %v417 = vunpack.c.l.b16 %v269
  %v418 = vunpack.c.l.b16 %v270
  %v419 = vunpack.c.l.b16 %v271
  %v420 = vunpack.c.l.b16 %v272
  %v421 = vunpack.c.l.b16 %v273
  %v422 = vunpack.c.l.b16 %v274
  %v423 = vunpack.c.l.b16 %v275
  %v424 = vunpack.c.l.b16 %v276
  %v425 = vunpack.c.l.b16 %v277
  %v426 = vunpack.c.l.b16 %v278
  %v427 = vunpack.c.l.b16 %v279
  %v428 = vunpack.c.l.b16 %v280
  %v429 = vunpack.c.l.b16 %v281
  %v430 = vunpack.c.l.b16 %v282
  %v431 = vunpack.c.l.b16 %v283
  %v432 = vunpack.c.l.b16 %v284
  %v433 = vunpack.c.l.b16 %v285
  %v434 = vunpack.c.l.b16 %v286
  %v435 = vunpack.c.l.b16 %v287
  %v436 = vunpack.c.l.b16 %v288
  %v437 = vunpack.c.l.b16 %v289
  %v438 = vunpack.c.l.b16 %v290
  %v439 = vunpack.c.l.b16 %v291
  %v440 = vunpack.c.l.b16 %v292
  %v441 = vunpack.c.l.b16 %v293
  %v442 = vunpack.c.l.b16 %v294
  %v443 = vunpack.c.l.b16 %v295
  %v444 = vunpack.c.l.b16 %v296
  %v445 = vunpack.c.l.b16 %v297
  %v446 = vunpack.c.l.b16 %v298
  %v447 = vunpack.c.l.b16 %v299
  %v448 = vunpack.c.l.b16 %v300
  %v449 = vunpack.c.l.b16 %v301
  %v450 = vunpack.c.l.b16 %v302
  %v451 = vunpack.c.l.b16 %v303
  %v452 = vunpack.c.l.b16 %v304
  %v453 = vunpack.c.l.b16 %v305
  %v454 = vunpack.c.l.b16 %v306
  %v455 = vunpack.c.l.b16 %v307
  %v456 = vunpack.c.l.b16 %v308
  %v457 = vunpack.c.l.b16 %v309
  %v458 = vunpack.c.l.b16 %v310
  %v459 = vunpack.c.l.b16 %v311
  %v460 = vunpack.c.l.b16 %v312
  %v461 = vunpack.c.l.b16 %v313
  %v462 = vunpack.c.l.b16 %v314
  %v463 = vunpack.c.l.b16 %v315
  %v464 = vunpack.c.l.b16 %v316
  %v465 = vunpack.c.l.b16 %v317
  %v466 = vunpack.c.l.b16 %v318
  %v467 = vunpack.c.l.b16 %v319
  %v468 = vunpack.c.l.b16 %v320
  %v469 = vunpack.c.l.b16 %v321
  %v470 = vunpack.c.l.b16 %v322
  %v471 = vunpack.c.l.b16 %v323
  %v472 = vunpack.c.l.b16 %v324
  %v473 = vunpack.c.l.b16 %v325
  %v474 = vunpack.c.l.b16 %v326
  %v475 = vunpack.c.l.b16 %v327
  %v476 = vunpack.c.l.b16 %v328
  %v477 = vunpack.c.l.b16 %v329
  %v478 = vunpack.c.l.b16 %v330
  %v479 = vunpack.c.l.b16 %v331
  %v480 = vunpack.c.l.b16 %v332
  %v481 = vunpack.c.l.b16 %v333
  %v482 = vunpack.c.l.b16 %v334
  %v483 = vunpack.c.l.b16 %v335
  %v484 = vunpack.c.l.b16 %v336
  %v485 = vunpack.c.l.b16 %v337
  %v486 = vunpack.c.l.b16 %v338
  %v487 = vunpack.c.l.b16 %v339
  %v488 = vpack.c.b16 %v417, %v416
  %v489 = vpack.c.b16 %v419, %v418
  %v490 = vpack.c.b16 %v421, %v420
  %v491 = vpack.c.b16 %v423, %v422
  %v492 = vpack.c.b16 %v425, %v424
  %v493 = vpack.c.b16 %v427, %v426
  %v494 = vpack.c.b16 %v429, %v428
  %v495 = vpack.c.b16 %v431, %v430
  %v496 = vpack.c.b16 %v433, %v432
  %v497 = vpack.c.b16 %v435, %v434
  %v498 = vpack.c.b16 %v437, %v436
  %v499 = vpack.c.b16 %v439, %v438
  %v500 = vpack.c.b16 %v441, %v440
  %v501 = vpack.c.b16 %v443, %v442
  %v502 = vpack.c.b16 %v445, %v444
  %v503 = vpack.c.b16 %v447, %v446
  %v504 = vpack.c.b16 %v449, %v448
  %v505 = vpack.c.b16 %v451, %v450
  %v506 = vpack.c.b16 %v453, %v452
  %v507 = vpack.c.b16 %v455, %v454
  %v508 = vpack.c.b16 %v457, %v456
  %v509 = vpack.c.b16 %v459, %v458
  %v510 = vpack.c.b16 %v461, %v460
  %v511 = vpack.c.b16 %v463, %v462
  %v512 = vpack.c.b16 %v465, %v464
  %v513 = vpack.c.b16 %v467, %v466
  %v514 = vpack.c.b16 %v469, %v468
  %v515 = vpack.c.b16 %v471, %v470
  %v516 = vpack.c.b16 %v473, %v472
  %v517 = vpack.c.b16 %v475, %v474
  %v518 = vpack.c.b16 %v477, %v476
  %v519 = vpack.c.b16 %v479, %v478
  %v520 = vpack.c.b16 %v481, %v480
  %v521 = vpack.c.b16 %v483, %v482
  %v522 = vpack.c.b16 %v485, %v484
  %v523 = vpack.c.b16 %v487, %v486
  %v561 = vsel %vm237, %v234, 0
  %v564 = vsel %vm237, %v236, 0
  %566 = vmatpush.bf16.msra.mxu0 %v495
  %567 = vmatpush.bf16.msra.mxu0 %v494
  %568 = vmatpush.bf16.msra.mxu0 %v493
  %569 = vmatpush.bf16.msra.mxu0 %v492
  %570 = vmatpush.bf16.msra.mxu0 %v491
  %571 = vmatpush.bf16.msra.mxu0 %v490
  %572 = vmatpush.bf16.msra.mxu0 %v489
  %573 = vmatpush.bf16.msra.mxu0 %v488
  %574 = vmatmul.bf16.gmra.mxu0 %v239
  %v575 = vpop.f32.mrf.mxu0
  %v576 = vadd.f32 %v342, %v575
  %v577 = vpop.f32.mrf.mxu0
  %v578 = vadd.f32 %v342, %v577
  %579 = vmatmul.bf16.gmra.mxu0 %v242
  %v580 = vpop.f32.mrf.mxu0
  %v581 = vadd.f32 %v342, %v580
  %v582 = vpop.f32.mrf.mxu0
  %v583 = vadd.f32 %v342, %v582
  %584 = vdwg.mxu0
  %585 = vmatpush.bf16.msra.mxu0 %v503
  %586 = vmatpush.bf16.msra.mxu0 %v502
  %587 = vmatpush.bf16.msra.mxu0 %v501
  %588 = vmatpush.bf16.msra.mxu0 %v500
  %589 = vmatpush.bf16.msra.mxu0 %v499
  %590 = vmatpush.bf16.msra.mxu0 %v498
  %591 = vmatpush.bf16.msra.mxu0 %v497
  %592 = vmatpush.bf16.msra.mxu0 %v496
  %593 = vmatmul.bf16.gmra.mxu0 %v246
  %v594 = vpop.f32.mrf.mxu0
  %v595 = vadd.f32 %v576, %v594
  %v596 = vpop.f32.mrf.mxu0
  %v597 = vadd.f32 %v578, %v596
  %598 = vmatmul.bf16.gmra.mxu0 %v250
  %v599 = vpop.f32.mrf.mxu0
  %v600 = vadd.f32 %v581, %v599
  %v601 = vpop.f32.mrf.mxu0
  %v602 = vadd.f32 %v583, %v601
  %603 = vdwg.mxu0
  %604 = vmatpush.bf16.msra.mxu0 %v511
  %605 = vmatpush.bf16.msra.mxu0 %v510
  %606 = vmatpush.bf16.msra.mxu0 %v509
  %607 = vmatpush.bf16.msra.mxu0 %v508
  %608 = vmatpush.bf16.msra.mxu0 %v507
  %609 = vmatpush.bf16.msra.mxu0 %v506
  %610 = vmatpush.bf16.msra.mxu0 %v505
  %611 = vmatpush.bf16.msra.mxu0 %v504
  %612 = vmatmul.bf16.gmra.mxu0 %v254
  %v613 = vpop.f32.mrf.mxu0
  %v614 = vadd.f32 %v595, %v613
  %v615 = vpop.f32.mrf.mxu0
  %v616 = vadd.f32 %v597, %v615
  %617 = vmatmul.bf16.gmra.mxu0 %v258
  %v618 = vpop.f32.mrf.mxu0
  %v619 = vadd.f32 %v600, %v618
  %v620 = vpop.f32.mrf.mxu0
  %v621 = vadd.f32 %v602, %v620
  %622 = vdwg.mxu0
  %623 = vmatpush.bf16.msra.mxu0 %v519
  %624 = vmatpush.bf16.msra.mxu0 %v518
  %625 = vmatpush.bf16.msra.mxu0 %v517
  %626 = vmatpush.bf16.msra.mxu0 %v516
  %627 = vmatpush.bf16.msra.mxu0 %v515
  %628 = vmatpush.bf16.msra.mxu0 %v514
  %629 = vmatpush.bf16.msra.mxu0 %v513
  %630 = vmatpush.bf16.msra.mxu0 %v512
  %631 = vmatmul.bf16.gmra.mxu0 %v262
  %v632 = vpop.f32.mrf.mxu0
  %v633 = vadd.f32 %v614, %v632
  %v634 = vpop.f32.mrf.mxu0
  %v635 = vadd.f32 %v616, %v634
  %636 = vmatmul.bf16.gmra.mxu0 %v266
  %v637 = vpop.f32.mrf.mxu0
  %v638 = vadd.f32 %v619, %v637
  %v639 = vpop.f32.mrf.mxu0
  %v640 = vadd.f32 %v621, %v639
  %641 = vdwg.mxu0
  %642 = vmatpush.bf16.msra.mxu0 0
  %643 = vmatpush.bf16.msra.mxu0 0
  %644 = vmatpush.bf16.msra.mxu0 0
  %645 = vmatpush.bf16.msra.mxu0 0
  %646 = vmatpush.bf16.msra.mxu0 %v523
  %647 = vmatpush.bf16.msra.mxu0 %v522
  %648 = vmatpush.bf16.msra.mxu0 %v521
  %649 = vmatpush.bf16.msra.mxu0 %v520
  %650 = vmatmul.bf16.gmra.mxu0 %v561
  %v651 = vpop.f32.mrf.mxu0
  %v652 = vadd.f32 %v633, %v651
  %v653 = vpop.f32.mrf.mxu0
  %v654 = vadd.f32 %v635, %v653
  %655 = vmatmul.bf16.gmra.mxu0 %v564
  %v656 = vpop.f32.mrf.mxu0
  %v657 = vadd.f32 %v638, %v656
  %v658 = vpop.f32.mrf.mxu0
  %v659 = vadd.f32 %v640, %v658
  %660 = vdwg.mxu0
  %661 = vst [vmem:[%s3] sm:$0xff] %v652
  %662 = vst [vmem:[%s3 + $0x8] sm:$0xff] %v654
  %663 = vst [vmem:[%s3 + $0x10] sm:$0xff] %v657
  %664 = vst [vmem:[%s3 + $0x18] sm:$0xff] %v659
  // Predicated region
  $region14: #{_lambda_.1} parent=0 // pred_check
    _
  $region15: #{_lambda_.1} parent=0 // pred_check_branch
    %666 = sbr.rel (0) target = $region17
  $region16: #{_lambda_.1} parent=0 // pred_region
    _
  $region17: #{_lambda_.1} parent=0 // pred_fallthru
    _
  // Predicated region
  $region18: #{_lambda_.1} parent=0 // pred_check
    _
  $region19: #{_lambda_.1} parent=0 // pred_check_branch
    %668 = sbr.rel (0) target = $region21
  $region20: #{_lambda_.1} parent=0 // pred_region
    _
  $region21: #{_lambda_.1} parent=0 // pred_fallthru
    _

</llo_original>
